<compile_context>
chip_gen: v7x
topology: tpu7x:2x2x1
jax: 0.10.0
libtpu: 0.0.40
codegen_flags: <defaults>
</compile_context>

<pallas_src>
import jax
import jax.numpy as jnp
from jax import lax
from jax.experimental import pallas as pl
from jax.experimental.pallas import tpu as pltpu


# ----------------------------- Pallas kernel ---------------------------------
def inception_kernel(x_ref, wbig_ref, bbig_ref, w23_ref, b23_ref, out_ref):
    f32 = jnp.float32
    C4 = out_ref.shape[1] // 4
    L = x_ref.shape[2]

    x = x_ref[0].astype(f32)                                    # (Cin, L)

    # --- branch 4 pre-step: maxpool(3, stride=1, pad=1) along L (f32, VPU) ---
    neg = jnp.full((x.shape[0], 1), -jnp.inf, f32)
    xpad = jnp.concatenate([neg, x, neg], axis=1)               # (Cin, L+2)
    xpool = jnp.maximum(jnp.maximum(xpad[:, 0:L], xpad[:, 1:L + 1]),
                        xpad[:, 2:L + 2])                       # (Cin, L)

    # --- all four 1x1 convs as ONE bf16 MXU matmul ---------------------------
    #   [ w1 ; w2a ; w3a |  0 ]   [   x   ]
    #   [  0 ;  0  ;  0  | w4 ] @ [ xpool ]   ->  rows = [y1 | h2 | h3 | y4]
    x2 = jnp.concatenate([x, xpool], axis=0).astype(jnp.bfloat16)   # (2*Cin, L)
    h = jnp.dot(wbig_ref[...], x2, preferred_element_type=f32) + bbig_ref[...]

    y1 = h[0:C4]                                                # (C4, L)
    h23 = h[C4:3 * C4]                                          # (2*C4, L)
    y4 = h[3 * C4:4 * C4]                                       # (C4, L)

    # --- 3-tap and 5-tap convs as ONE im2col bf16 matmul ---------------------
    # zero-pad 2 columns each side (sequence boundary = zero padding, matching
    # PyTorch conv padding), stack the 5 shifted windows on the K axis.
    z2 = jnp.zeros((2 * C4, 2), f32)
    hpad = jnp.concatenate([z2, h23, z2], axis=1)               # (2*C4, L+4)
    g = jnp.concatenate([hpad[:, j:j + L] for j in range(5)],
                        axis=0).astype(jnp.bfloat16)            # (10*C4, L)
    y23 = jnp.dot(w23_ref[...], g, preferred_element_type=f32) + b23_ref[...]

    # --- write each branch straight into its slice of the output block -------
    od = out_ref.dtype
    out_ref[0, 0:C4, :] = y1.astype(od)
    out_ref[0, C4:2 * C4, :] = y23[0:C4].astype(od)
    out_ref[0, 2 * C4:3 * C4, :] = y23[C4:2 * C4].astype(od)
    out_ref[0, 3 * C4:4 * C4, :] = y4.astype(od)


# ------------------------- host-side weight fusion ---------------------------
def _build_fused_weights(params):
    """Fuse the PyTorch Conv1d weights into the two block matrices the kernel uses."""
    (w1, b1, w2a, b2a, w2b, b2b, w3a, b3a, w3b, b3b, w4, b4) = params
    C4, Cin = w1.shape[0], w1.shape[1]

    # (4*C4, 2*Cin): rows [branch1 | branch2-1x1 | branch3-1x1 | branch4-1x1],
    # column blocks [x | maxpool(x)].
    wbig = jnp.zeros((4 * C4, 2 * Cin), jnp.float32)
    wbig = wbig.at[0 * C4:1 * C4, 0:Cin].set(w1[:, :, 0])
    wbig = wbig.at[1 * C4:2 * C4, 0:Cin].set(w2a[:, :, 0])
    wbig = wbig.at[2 * C4:3 * C4, 0:Cin].set(w3a[:, :, 0])
    wbig = wbig.at[3 * C4:4 * C4, Cin:2 * Cin].set(w4[:, :, 0])
    bbig = jnp.concatenate([b1, b2a, b3a, b4])[:, None]            # (4*C4, 1)

    # (2*C4, 10*C4): im2col weight.  Column block j holds the taps for the
    # window shifted by d = j - 2 of [h2 ; h3]: the 3-tap conv (pad=1) uses
    # j = 1..3, the 5-tap conv (pad=2) uses all five.
    w23 = jnp.zeros((2 * C4, 10 * C4), jnp.float32)
    for k in range(3):                                             # branch 2
        j = k + 1
        w23 = w23.at[0:C4, j * 2 * C4:j * 2 * C4 + C4].set(w2b[:, :, k])
    for k in range(5):                                             # branch 3
        j = k
        w23 = w23.at[C4:2 * C4, j * 2 * C4 + C4:(j + 1) * 2 * C4].set(w3b[:, :, k])
    b23 = jnp.concatenate([b2b, b3b])[:, None]                     # (2*C4, 1)

    return (wbig.astype(jnp.bfloat16), bbig.astype(jnp.float32),
            w23.astype(jnp.bfloat16), b23.astype(jnp.float32))


# --------------------------------- wrapper ------------------------------------
def inception_block(x_ncl, params):
    """x_ncl: (N, Cin, L) float32 in PyTorch layout. Returns (N, Cout, L)."""
    N, Cin, L = x_ncl.shape
    C4 = params[0].shape[0]
    Cout = 4 * C4

    wbig, bbig, w23, b23 = _build_fused_weights(params)

    # Explicit VMEM budget: double-buffered x/out blocks + weights + intermediates.
    est = (2 * (Cin * L + Cout * L) * 4                        # pipelined blocks (f32)
           + (3 * Cin + 4 * C4 + 14 * C4) * L * 4              # kernel intermediates
           + wbig.size * 2 + w23.size * 2 + (bbig.size + b23.size) * 4)
    vmem_limit = int(min(64 * 2 ** 20, max(32 * 2 ** 20, 2 * est)))

    def full(a):
        nd = a.ndim
        return pl.BlockSpec(a.shape, lambda n, _nd=nd: (0,) * _nd)

    return pl.pallas_call(
        inception_kernel,
        out_shape=jax.ShapeDtypeStruct((N, Cout, L), x_ncl.dtype),
        grid_spec=pltpu.PrefetchScalarGridSpec(
            num_scalar_prefetch=0,
            grid=(N,),
            in_specs=[
                pl.BlockSpec((1, Cin, L), lambda n: (n, 0, 0)),
                full(wbig), full(bbig), full(w23), full(b23),
            ],
            out_specs=pl.BlockSpec((1, Cout, L), lambda n: (n, 0, 0)),
        ),
        compiler_params=pltpu.CompilerParams(
            dimension_semantics=("parallel",),
            vmem_limit_bytes=vmem_limit,
        ),
    )(x_ncl, wbig, bbig, w23, b23)


# ------------------------- pure-JAX reference (PyTorch semantics) -------------
def _conv1d_ref(x_ncl, w_oik, b, pad):
    y = lax.conv_general_dilated(
        x_ncl, w_oik, window_strides=(1,), padding=[(pad, pad)],
        dimension_numbers=("NCH", "OIH", "NCH"))
    return y + b[None, :, None]


def inception_ref(x_ncl, params):
    (w1, b1, w2a, b2a, w2b, b2b, w3a, b3a, w3b, b3b, w4, b4) = params
    y1 = _conv1d_ref(x_ncl, w1, b1, 0)
    h2 = _conv1d_ref(x_ncl, w2a, b2a, 0)
    y2 = _conv1d_ref(h2, w2b, b2b, 1)
    h3 = _conv1d_ref(x_ncl, w3a, b3a, 0)
    y3 = _conv1d_ref(h3, w3b, b3b, 2)
    xp = lax.reduce_window(x_ncl, -jnp.inf, lax.max, (1, 1, 3), (1, 1, 1),
                           [(0, 0), (0, 0), (1, 1)])
    y4 = _conv1d_ref(xp, w4, b4, 0)
    return jnp.concatenate([y1, y2, y3, y4], axis=1)


# ------------------------------ parameter init --------------------------------
def make_params(key, in_channels, out_channels):
    """PyTorch Conv1d layout: weight (C_out, C_in, K), bias (C_out,)."""
    C4 = out_channels // 4
    ks = jax.random.split(key, 12)
    s = 0.1
    conv = lambda k, o, i, kw: s * jax.random.normal(k, (o, i, kw), jnp.float32)
    vec = lambda k, o: s * jax.random.normal(k, (o,), jnp.float32)
    w1, b1 = conv(ks[0], C4, in_channels, 1), vec(ks[1], C4)
    w2a, b2a = conv(ks[2], C4, in_channels, 1), vec(ks[3], C4)
    w2b, b2b = conv(ks[4], C4, C4, 3), vec(ks[5], C4)
    w3a, b3a = conv(ks[6], C4, in_channels, 1), vec(ks[7], C4)
    w3b, b3b = conv(ks[8], C4, C4, 5), vec(ks[9], C4)
    w4, b4 = conv(ks[10], C4, in_channels, 1), vec(ks[11], C4)
    return (w1, b1, w2a, b2a, w2b, b2b, w3a, b3a, w3b, b3b, w4, b4)


if __name__ == "__main__":
    key = jax.random.PRNGKey(0)
    k_x, k_p = jax.random.split(key)

    N, Cin, L = 2, 8, 16
    out_channels = 32

    x = jax.random.normal(k_x, (N, Cin, L), jnp.float32)
    params = make_params(k_p, Cin, out_channels)

    out = jax.block_until_ready(jax.jit(inception_block)(x, params))
    ref = jax.block_until_ready(inception_ref(x, params))

    assert out.shape == (N, out_channels, L), out.shape
    max_err = float(jnp.max(jnp.abs(out - ref)))
    # bf16 MXU operands (f32 accumulation) -> slightly looser tolerance.
    assert jnp.allclose(out, ref, atol=2e-2, rtol=2e-2), max_err
    print("KERNEL_OK")
</pallas_src>

<mosaic_0001>
module attributes {stable_mosaic.version = 11 : i64} {
  func.func @inception_kernel(%arg0: i32, %arg1: memref<1x8x16xf32, #tpu.memory_space<vmem>>, %arg2: memref<32x16xbf16, #tpu.memory_space<vmem>>, %arg3: memref<32x1xf32, #tpu.memory_space<vmem>>, %arg4: memref<16x80xbf16, #tpu.memory_space<vmem>>, %arg5: memref<16x1xf32, #tpu.memory_space<vmem>>, %arg6: memref<1x32x16xf32, #tpu.memory_space<vmem>>) attributes {dimension_semantics = [#tpu.dimension_semantics<parallel>], iteration_bounds = array<i64: 2>, scalar_prefetch = 0 : i64, scratch_operands = 0 : i64, tpu.core_type = #tpu.core_type<tc>, window_params = [{transform_indices = @transform_0, window_bounds = array<i64: 1, 8, 16>}, {pipeline_mode = #tpu.pipeline_mode<synchronous>, transform_indices = @transform_1, window_bounds = array<i64: 32, 16>}, {pipeline_mode = #tpu.pipeline_mode<synchronous>, transform_indices = @transform_2, window_bounds = array<i64: 32, 1>}, {pipeline_mode = #tpu.pipeline_mode<synchronous>, transform_indices = @transform_3, window_bounds = array<i64: 16, 80>}, {pipeline_mode = #tpu.pipeline_mode<synchronous>, transform_indices = @transform_4, window_bounds = array<i64: 16, 1>}, {transform_indices = @transform_5, window_bounds = array<i64: 1, 32, 16>}]} {
    %c0 = arith.constant 0 : index
    %c0_0 = arith.constant 0 : index
    %c0_1 = arith.constant 0 : index
    %0 = vector.load %arg1[%c0, %c0_0, %c0_1] : memref<1x8x16xf32, #tpu.memory_space<vmem>>, vector<1x8x16xf32>
    %1 = vector.shape_cast %0 : vector<1x8x16xf32> to vector<8x16xf32>
    %cst = arith.constant 0xFF800000 : f32
    %2 = vector.broadcast %cst : f32 to vector<8x1xf32>
    %3 = tpu.concatenate %2, %1, %2 in 1 : vector<8x1xf32>, vector<8x16xf32>, vector<8x1xf32> -> vector<8x18xf32>
    %4 = vector.extract_strided_slice %3 {offsets = [0, 0], sizes = [8, 16], strides = [1, 1]} : vector<8x18xf32> to vector<8x16xf32>
    %5 = vector.extract_strided_slice %3 {offsets = [0, 1], sizes = [8, 16], strides = [1, 1]} : vector<8x18xf32> to vector<8x16xf32>
    %6 = arith.maximumf %4, %5 : vector<8x16xf32>
    %7 = vector.extract_strided_slice %3 {offsets = [0, 2], sizes = [8, 16], strides = [1, 1]} : vector<8x18xf32> to vector<8x16xf32>
    %8 = arith.maximumf %6, %7 : vector<8x16xf32>
    %9 = tpu.concatenate %1, %8 in 0 : vector<8x16xf32>, vector<8x16xf32> -> vector<16x16xf32>
    %10 = arith.truncf %9 : vector<16x16xf32> to vector<16x16xbf16>
    %c0_2 = arith.constant 0 : index
    %c0_3 = arith.constant 0 : index
    %11 = vector.load %arg2[%c0_2, %c0_3] : memref<32x16xbf16, #tpu.memory_space<vmem>>, vector<32x16xbf16>
    %cst_4 = arith.constant dense<0.000000e+00> : vector<32x16xf32>
    %12 = tpu.matmul %11, %10, %cst_4 {dimension_numbers = #tpu.dot_dimension_numbers<[1], [0], [0], [1], [0, 0, 1, 1], [], []>} : vector<32x16xbf16>, vector<16x16xbf16>, vector<32x16xf32> -> vector<32x16xf32>
    %c0_5 = arith.constant 0 : index
    %c0_6 = arith.constant 0 : index
    %13 = vector.load %arg3[%c0_5, %c0_6] : memref<32x1xf32, #tpu.memory_space<vmem>>, vector<32x1xf32>
    %14 = vector.broadcast %13 : vector<32x1xf32> to vector<32x16xf32>
    %15 = arith.addf %12, %14 : vector<32x16xf32>
    %16 = vector.extract_strided_slice %15 {offsets = [0, 0], sizes = [8, 16], strides = [1, 1]} : vector<32x16xf32> to vector<8x16xf32>
    %17 = vector.extract_strided_slice %15 {offsets = [8, 0], sizes = [16, 16], strides = [1, 1]} : vector<32x16xf32> to vector<16x16xf32>
    %18 = vector.extract_strided_slice %15 {offsets = [24, 0], sizes = [8, 16], strides = [1, 1]} : vector<32x16xf32> to vector<8x16xf32>
    %cst_7 = arith.constant 0.000000e+00 : f32
    %19 = vector.broadcast %cst_7 : f32 to vector<16x2xf32>
    %20 = tpu.concatenate %19, %17, %19 in 1 : vector<16x2xf32>, vector<16x16xf32>, vector<16x2xf32> -> vector<16x20xf32>
    %21 = vector.extract_strided_slice %20 {offsets = [0, 0], sizes = [16, 16], strides = [1, 1]} : vector<16x20xf32> to vector<16x16xf32>
    %22 = vector.extract_strided_slice %20 {offsets = [0, 1], sizes = [16, 16], strides = [1, 1]} : vector<16x20xf32> to vector<16x16xf32>
    %23 = vector.extract_strided_slice %20 {offsets = [0, 2], sizes = [16, 16], strides = [1, 1]} : vector<16x20xf32> to vector<16x16xf32>
    %24 = vector.extract_strided_slice %20 {offsets = [0, 3], sizes = [16, 16], strides = [1, 1]} : vector<16x20xf32> to vector<16x16xf32>
    %25 = vector.extract_strided_slice %20 {offsets = [0, 4], sizes = [16, 16], strides = [1, 1]} : vector<16x20xf32> to vector<16x16xf32>
    %26 = tpu.concatenate %21, %22, %23, %24, %25 in 0 : vector<16x16xf32>, vector<16x16xf32>, vector<16x16xf32>, vector<16x16xf32>, vector<16x16xf32> -> vector<80x16xf32>
    %27 = arith.truncf %26 : vector<80x16xf32> to vector<80x16xbf16>
    %c0_8 = arith.constant 0 : index
    %c0_9 = arith.constant 0 : index
    %28 = vector.load %arg4[%c0_8, %c0_9] : memref<16x80xbf16, #tpu.memory_space<vmem>>, vector<16x80xbf16>
    %cst_10 = arith.constant dense<0.000000e+00> : vector<16x16xf32>
    %29 = tpu.matmul %28, %27, %cst_10 {dimension_numbers = #tpu.dot_dimension_numbers<[1], [0], [0], [1], [0, 0, 1, 1], [], []>} : vector<16x80xbf16>, vector<80x16xbf16>, vector<16x16xf32> -> vector<16x16xf32>
    %c0_11 = arith.constant 0 : index
    %c0_12 = arith.constant 0 : index
    %30 = vector.load %arg5[%c0_11, %c0_12] : memref<16x1xf32, #tpu.memory_space<vmem>>, vector<16x1xf32>
    %31 = vector.broadcast %30 : vector<16x1xf32> to vector<16x16xf32>
    %32 = arith.addf %29, %31 : vector<16x16xf32>
    %c0_13 = arith.constant 0 : index
    %c0_14 = arith.constant 0 : index
    %c0_15 = arith.constant 0 : index
    %33 = vector.load %arg6[%c0_13, %c0_14, %c0_15] : memref<1x32x16xf32, #tpu.memory_space<vmem>>, vector<1x8x16xf32>
    %34 = vector.shape_cast %33 : vector<1x8x16xf32> to vector<8x16xf32>
    %35 = vector.shape_cast %16 : vector<8x16xf32> to vector<1x8x16xf32>
    tpu.vector_store %arg6[%c0_13, %c0_14, %c0_15], %35 {strides = array<i32>} : memref<1x32x16xf32, #tpu.memory_space<vmem>>, vector<1x8x16xf32>,
    %36 = vector.extract_strided_slice %32 {offsets = [0, 0], sizes = [8, 16], strides = [1, 1]} : vector<16x16xf32> to vector<8x16xf32>
    %c0_16 = arith.constant 0 : index
    %c8 = arith.constant 8 : index
    %c0_17 = arith.constant 0 : index
    %37 = vector.load %arg6[%c0_16, %c8, %c0_17] : memref<1x32x16xf32, #tpu.memory_space<vmem>>, vector<1x8x16xf32>
    %38 = vector.shape_cast %37 : vector<1x8x16xf32> to vector<8x16xf32>
    %39 = vector.shape_cast %36 : vector<8x16xf32> to vector<1x8x16xf32>
    tpu.vector_store %arg6[%c0_16, %c8, %c0_17], %39 {strides = array<i32>} : memref<1x32x16xf32, #tpu.memory_space<vmem>>, vector<1x8x16xf32>,
    %40 = vector.extract_strided_slice %32 {offsets = [8, 0], sizes = [8, 16], strides = [1, 1]} : vector<16x16xf32> to vector<8x16xf32>
    %c0_18 = arith.constant 0 : index
    %c16 = arith.constant 16 : index
    %c0_19 = arith.constant 0 : index
    %41 = vector.load %arg6[%c0_18, %c16, %c0_19] : memref<1x32x16xf32, #tpu.memory_space<vmem>>, vector<1x8x16xf32>
    %42 = vector.shape_cast %41 : vector<1x8x16xf32> to vector<8x16xf32>
    %43 = vector.shape_cast %40 : vector<8x16xf32> to vector<1x8x16xf32>
    tpu.vector_store %arg6[%c0_18, %c16, %c0_19], %43 {strides = array<i32>} : memref<1x32x16xf32, #tpu.memory_space<vmem>>, vector<1x8x16xf32>,
    %c0_20 = arith.constant 0 : index
    %c24 = arith.constant 24 : index
    %c0_21 = arith.constant 0 : index
    %44 = vector.load %arg6[%c0_20, %c24, %c0_21] : memref<1x32x16xf32, #tpu.memory_space<vmem>>, vector<1x8x16xf32>
    %45 = vector.shape_cast %44 : vector<1x8x16xf32> to vector<8x16xf32>
    %46 = vector.shape_cast %18 : vector<8x16xf32> to vector<1x8x16xf32>
    tpu.vector_store %arg6[%c0_20, %c24, %c0_21], %46 {strides = array<i32>} : memref<1x32x16xf32, #tpu.memory_space<vmem>>, vector<1x8x16xf32>,
    return
  }
  func.func @transform_0(%arg0: i32) -> (i32, i32, i32) {
    %c0_i32 = arith.constant 0 : i32
    %c0_i32_0 = arith.constant 0 : i32
    %c0_i32_1 = arith.constant 0 : i32
    return %arg0, %c0_i32, %c0_i32_0 : i32, i32, i32
  }
  func.func @transform_1(%arg0: i32) -> (i32, i32) {
    %c0_i32 = arith.constant 0 : i32
    %c0_i32_0 = arith.constant 0 : i32
    %c0_i32_1 = arith.constant 0 : i32
    return %c0_i32, %c0_i32_0 : i32, i32
  }
  func.func @transform_2(%arg0: i32) -> (i32, i32) {
    %c0_i32 = arith.constant 0 : i32
    %c0_i32_0 = arith.constant 0 : i32
    %c0_i32_1 = arith.constant 0 : i32
    return %c0_i32, %c0_i32_0 : i32, i32
  }
  func.func @transform_3(%arg0: i32) -> (i32, i32) {
    %c0_i32 = arith.constant 0 : i32
    %c0_i32_0 = arith.constant 0 : i32
    %c0_i32_1 = arith.constant 0 : i32
    return %c0_i32, %c0_i32_0 : i32, i32
  }
  func.func @transform_4(%arg0: i32) -> (i32, i32) {
    %c0_i32 = arith.constant 0 : i32
    %c0_i32_0 = arith.constant 0 : i32
    %c0_i32_1 = arith.constant 0 : i32
    return %c0_i32, %c0_i32_0 : i32, i32
  }
  func.func @transform_5(%arg0: i32) -> (i32, i32, i32) {
    %c0_i32 = arith.constant 0 : i32
    %c0_i32_0 = arith.constant 0 : i32
    %c0_i32_1 = arith.constant 0 : i32
    return %arg0, %c0_i32, %c0_i32_0 : i32, i32, i32
  }
}

</mosaic_0001>

<llo_original>
// kernel: inception_block.1
$region0: #{inception_block.1}
  #allocation0 [shape = 'u32[]', space=smem, size = 0x4, offset = 0x4, fixed_abs, tag = 'smem constant byte address 0x4 - core index']
  #allocation1 [shape = 'u32[144,128]{1,0:T(1,128)}', space=vmem, size = 0x12000, scoped, tag = 'internal scratch']
  %s0 = inlined_call_operand.vmem [shape: f32[2,8,16], index: 0, kind: input, shape index: {}]
  %s1 = inlined_call_operand.vmem [shape: bf16[32,16], index: 1, kind: input, shape index: {}]
  %s2 = inlined_call_operand.vmem [shape: f32[32,1], index: 2, kind: input, shape index: {}]
  %s3 = inlined_call_operand.vmem [shape: bf16[16,80], index: 3, kind: input, shape index: {}]
  %s4 = inlined_call_operand.vmem [shape: f32[16,1], index: 4, kind: input, shape index: {}]
  %s5 = inlined_call_operand.vmem [shape: f32[2,32,16], index: 5, kind: output, shape index: {}]
  %s6 = sld [smem:[#allocation0]]
  $region53: #{inception_block.1} parent=0
    _
  %s8 = ssub.s32 1, %s6
  %s9 = scalar_select 0, %s8, %s6
  loop: start=0, step=1, limit=4
  $region2: #{inception_block.1} parent=0 // loop_pre_header
    _
  $region3: #{inception_block.1} parent=0 // loop_header
    %s11 = sphi 0, %s15
    %p12 = scmp.ge.s32.totalorder %s11, 4
    %s21 = sphi 0, %s23
    %s24 = sphi 0, %s21
    %s25 = sphi 0, %s24
    %s41 = sphi 0, %s25
    %s45 = sphi 0, %s45
    %s47 = sphi 0, %s45
    %s48 = sphi 0, %s47
    %s62 = sphi 0, %s48
    %s66 = sphi 0, %s66
    %s68 = sphi 0, %s66
    %s69 = sphi 0, %s68
    %s83 = sphi 0, %s69
    %s87 = sphi 0, %s87
    %s89 = sphi 0, %s87
    %s90 = sphi 0, %s89
    %s104 = sphi 0, %s90
    %s108 = sphi 0, %s108
    %s110 = sphi 0, %s108
    %s111 = sphi 0, %s110
    %s125 = sphi 0, %s111
    %s131 = sphi 0, %s133
    %s134 = sphi 0, %s131
    %s135 = sphi 0, %s134
    %s151 = sphi 0, %s135
  $region4: #{inception_block.1} parent=0 // loop_header_branch
    %14 = sbr.rel (%p12) target = $region8
  $region5: #{inception_block.1} parent=0 // loop_body
    %s16 = ssub.s32 %s11, 1
    %s17 = ssub.s32 %s11, 2
    %s18 = sadd.s32 %s11, 1
    %s19 = ssub.s32 %s11, %s18
    %p20 = scmp.eq.s32.totalorder %s19, 0
    %s22 = sadd.s32 %s21, 1
    %s23 = scalar_select %p20, %s21, %s22
    %p26 = pneg %p20
    %p27 = scmp.eq.s32.totalorder %s11, 1
    %p28 = por %p26, %p27
    %p29 = scmp.ne.s32.totalorder %s21, %s24
    %p30 = scmp.eq.s32.totalorder %s11, 0
    %p31 = por %p29, %p30
    %p32 = scmp.ne.s32.totalorder %s21, %s24
    %p33 = scmp.eq.s32.totalorder %s16, 1
    %p34 = por %p32, %p33
    %p35 = scmp.ne.s32.totalorder %s24, %s25
    %p36 = scmp.eq.s32.totalorder %s16, 0
    %p37 = por %p35, %p36
    %p38 = scmp.ne.s32.totalorder %s24, %s25
    %p39 = scmp.eq.s32.totalorder %s17, 1
    %p40 = por %p38, %p39
    %p42 = scmp.ne.s32.totalorder %s25, %s41
    %p43 = scmp.eq.s32.totalorder %s17, 0
    %p44 = por %p42, %p43
    %s46 = sadd.s32 %s45, 1
    %p49 = scmp.eq.s32.totalorder %s11, 1
    %p50 = scmp.ne.s32.totalorder %s45, %s47
    %p51 = scmp.eq.s32.totalorder %s11, 0
    %p52 = por %p50, %p51
    %p53 = scmp.ne.s32.totalorder %s45, %s47
    %p54 = scmp.eq.s32.totalorder %s16, 1
    %p55 = por %p53, %p54
    %p56 = scmp.ne.s32.totalorder %s47, %s48
    %p57 = scmp.eq.s32.totalorder %s16, 0
    %p58 = por %p56, %p57
    %p59 = scmp.ne.s32.totalorder %s47, %s48
    %p60 = scmp.eq.s32.totalorder %s17, 1
    %p61 = por %p59, %p60
    %p63 = scmp.ne.s32.totalorder %s48, %s62
    %p64 = scmp.eq.s32.totalorder %s17, 0
    %p65 = por %p63, %p64
    %s67 = sadd.s32 %s66, 1
    %p70 = scmp.eq.s32.totalorder %s11, 1
    %p71 = scmp.ne.s32.totalorder %s66, %s68
    %p72 = scmp.eq.s32.totalorder %s11, 0
    %p73 = por %p71, %p72
    %p74 = scmp.ne.s32.totalorder %s66, %s68
    %p75 = scmp.eq.s32.totalorder %s16, 1
    %p76 = por %p74, %p75
    %p77 = scmp.ne.s32.totalorder %s68, %s69
    %p78 = scmp.eq.s32.totalorder %s16, 0
    %p79 = por %p77, %p78
    %p80 = scmp.ne.s32.totalorder %s68, %s69
    %p81 = scmp.eq.s32.totalorder %s17, 1
    %p82 = por %p80, %p81
    %p84 = scmp.ne.s32.totalorder %s69, %s83
    %p85 = scmp.eq.s32.totalorder %s17, 0
    %p86 = por %p84, %p85
    %s88 = sadd.s32 %s87, 1
    %p91 = scmp.eq.s32.totalorder %s11, 1
    %p92 = scmp.ne.s32.totalorder %s87, %s89
    %p93 = scmp.eq.s32.totalorder %s11, 0
    %p94 = por %p92, %p93
    %p95 = scmp.ne.s32.totalorder %s87, %s89
    %p96 = scmp.eq.s32.totalorder %s16, 1
    %p97 = por %p95, %p96
    %p98 = scmp.ne.s32.totalorder %s89, %s90
    %p99 = scmp.eq.s32.totalorder %s16, 0
    %p100 = por %p98, %p99
    %p101 = scmp.ne.s32.totalorder %s89, %s90
    %p102 = scmp.eq.s32.totalorder %s17, 1
    %p103 = por %p101, %p102
    %p105 = scmp.ne.s32.totalorder %s90, %s104
    %p106 = scmp.eq.s32.totalorder %s17, 0
    %p107 = por %p105, %p106
    %s109 = sadd.s32 %s108, 1
    %p112 = scmp.eq.s32.totalorder %s11, 1
    %p113 = scmp.ne.s32.totalorder %s108, %s110
    %p114 = scmp.eq.s32.totalorder %s11, 0
    %p115 = por %p113, %p114
    %p116 = scmp.ne.s32.totalorder %s108, %s110
    %p117 = scmp.eq.s32.totalorder %s16, 1
    %p118 = por %p116, %p117
    %p119 = scmp.ne.s32.totalorder %s110, %s111
    %p120 = scmp.eq.s32.totalorder %s16, 0
    %p121 = por %p119, %p120
    %p122 = scmp.ne.s32.totalorder %s110, %s111
    %p123 = scmp.eq.s32.totalorder %s17, 1
    %p124 = por %p122, %p123
    %p126 = scmp.ne.s32.totalorder %s111, %s125
    %p127 = scmp.eq.s32.totalorder %s17, 0
    %p128 = por %p126, %p127
    %s129 = ssub.s32 %s11, %s18
    %p130 = scmp.eq.s32.totalorder %s129, 0
    %s132 = sadd.s32 %s131, 1
    %s133 = scalar_select %p130, %s131, %s132
    %p136 = pneg %p130
    %p137 = scmp.eq.s32.totalorder %s11, 1
    %p138 = por %p136, %p137
    %p139 = scmp.ne.s32.totalorder %s131, %s134
    %p140 = scmp.eq.s32.totalorder %s11, 0
    %p141 = por %p139, %p140
    %p142 = scmp.ne.s32.totalorder %s131, %s134
    %p143 = scmp.eq.s32.totalorder %s16, 1
    %p144 = por %p142, %p143
    %p145 = scmp.ne.s32.totalorder %s134, %s135
    %p146 = scmp.eq.s32.totalorder %s16, 0
    %p147 = por %p145, %p146
    %p148 = scmp.ne.s32.totalorder %s134, %s135
    %p149 = scmp.eq.s32.totalorder %s17, 1
    %p150 = por %p148, %p149
    %p152 = scmp.ne.s32.totalorder %s135, %s151
    %p153 = scmp.eq.s32.totalorder %s17, 0
    %p154 = por %p152, %p153
    %p155 = scmp.le.s32.totalorder 1, %s11
    %p156 = scmp.lt.s32.totalorder %s11, 3
    %p157 = pnand %p155, %p156
    %p158 = pneg %p157
    // Predicated region
    $region9: #{inception_block.1} parent=5 // pred_check
      _
    $region10: #{inception_block.1} parent=5 // pred_check_branch
      %160 = sbr.rel (%p157) target = $region12
    $region11: #{inception_block.1} parent=5 // pred_region
      %s161 = ssub.s32 %s11, 1
      // Predicated region
      $region13: #{inception_block.1} parent=11 // pred_check
        %p162 = pneg %p58
      $region14: #{inception_block.1} parent=11 // pred_check_branch
        %164 = sbr.rel (%p162) target = $region16
      $region15: #{inception_block.1} parent=11 // pred_region
        _
      $region16: #{inception_block.1} parent=11 // pred_fallthru
        _
      // Predicated region
      $region17: #{inception_block.1} parent=11 // pred_check
        %p165 = pneg %p79
      $region18: #{inception_block.1} parent=11 // pred_check_branch
        %167 = sbr.rel (%p165) target = $region20
      $region19: #{inception_block.1} parent=11 // pred_region
        _
      $region20: #{inception_block.1} parent=11 // pred_fallthru
        _
      // Predicated region
      $region21: #{inception_block.1} parent=11 // pred_check
        %p168 = pneg %p100
      $region22: #{inception_block.1} parent=11 // pred_check_branch
        %170 = sbr.rel (%p168) target = $region24
      $region23: #{inception_block.1} parent=11 // pred_region
        _
      $region24: #{inception_block.1} parent=11 // pred_fallthru
        _
      // Predicated region
      $region25: #{inception_block.1} parent=11 // pred_check
        %p171 = pneg %p121
      $region26: #{inception_block.1} parent=11 // pred_check_branch
        %173 = sbr.rel (%p171) target = $region28
      $region27: #{inception_block.1} parent=11 // pred_region
        _
      $region28: #{inception_block.1} parent=11 // pred_fallthru
        _
    $region12: #{inception_block.1} parent=5 // pred_fallthru
      _
    %p174 = scmp.lt.s32.totalorder %s11, 2
    // Predicated region
    $region29: #{inception_block.1} parent=5 // pred_check
      %p175 = pneg %p174
    $region30: #{inception_block.1} parent=5 // pred_check_branch
      %177 = sbr.rel (%p175) target = $region32
    $region31: #{inception_block.1} parent=5 // pred_region
      // Predicated region
      $region33: #{inception_block.1} parent=31 // pred_check
        %p178 = pneg %p31
      $region34: #{inception_block.1} parent=31 // pred_check_branch
        %180 = sbr.rel (%p178) target = $region36
      $region35: #{inception_block.1} parent=31 // pred_region
        %p181 = scmp.lt.s32.totalorder %s11, 1
        %s182 = scalar_select %p181, %s11, 1
        %s183 = smul.addr %s182, 8
        %s184 = scalar_lea.vmem %s0, %s183
      $region36: #{inception_block.1} parent=31 // pred_fallthru
        _
    $region32: #{inception_block.1} parent=5 // pred_fallthru
      _
    %p185 = scmp.le.s32.totalorder 1, %s11
    %p186 = scmp.lt.s32.totalorder %s11, 3
    %p187 = pnand %p185, %p186
    %p188 = pneg %p187
    // Predicated region
    $region37: #{inception_block.1} parent=5 // pred_check
      _
    $region38: #{inception_block.1} parent=5 // pred_check_branch
      %190 = sbr.rel (%p187) target = $region40
    $region39: #{inception_block.1} parent=5 // pred_region
      %s191 = ssub.s32 %s11, 1
      %p192 = scmp.lt.s32.totalorder %s16, 1
      %s193 = scalar_select %p192, %s16, 1
      %s194 = smul.addr %s193, 8
      %s195 = scalar_lea.vmem %s0, %s194
      %p196 = pneg %p37
      %p197 = pneg %p34
      %p198 = pneg %p58
      %p199 = pneg %p55
      %p200 = pneg %p79
      %p201 = pneg %p76
      %p202 = pneg %p100
      %p203 = pneg %p97
      %p204 = pneg %p121
      %p205 = pneg %p118
      %p206 = pneg %p147
      %p207 = pneg %p144
      %p208 = scmp.lt.s32.totalorder %s16, 1
      %s209 = scalar_select %p208, %s16, 1
      %s210 = smul.addr %s209, 4
      %s211 = smul.addr %s210, 8
      %s212 = scalar_lea.vmem %s5, %s211
      %p213 = scmp.lt.s32.totalorder %s16, 1
      %s214 = scalar_select %p213, %s16, 1
      %s215 = smul.addr %s214, 8
      %s216 = scalar_lea.vmem %s0, %s215
      %p217 = scmp.lt.s32.totalorder %s16, 1
      %s218 = scalar_select %p217, %s16, 1
      %s219 = smul.addr %s218, 4
      %s220 = smul.addr %s219, 8
      %s221 = scalar_lea.vmem %s5, %s220
      %v223 = vld [vmem:[%s216] sm:$0xff]
      %225 = vrot.lane.b32.xlu0 %v223, 1
      %v226 = vpop.permute.xlu0 %225
      %vm228 = vcmask 7168
      %v229 = vsel %vm228, -inf, %v226
      %vm230 = vcmask 138240
      %v231 = vsel %vm230, %v229, -inf
      %233 = vrot.lane.b32.xlu0 %v231, 127
      %v234 = vpop.permute.xlu0 %233
      %v236 = vmax.f32 %v231, %v234
      %237 = vrot.lane.b32.xlu0 %v231, 126
      %v238 = vpop.permute.xlu0 %237
      %v240 = vmax.f32 %v236, %v238
      %v241 = vpack.c.bf16 %v240, %v223
      %v242 = vld [vmem:[%s1] sm:$0xf]
      %v243 = vld [vmem:[%s1 + $0x4] sm:$0xf]
      %v244 = vld [vmem:[%s1 + $0x8] sm:$0xf]
      %v245 = vld [vmem:[%s1 + $0xc] sm:$0xf]
      %v246 = vld [vmem:[%s2] sm:$0xff]
      %v247 = vld [vmem:[%s2 + $0x8] sm:$0xff]
      %v248 = vld [vmem:[%s2 + $0x10] sm:$0xff]
      %v249 = vld [vmem:[%s2 + $0x18] sm:$0xff]
      %251 = vset.pattern.permute.xlu0 0
      %252 = vperm.xlu0 %251, %v246
      %v253 = vpop.permute.xlu0 %252
      %256 = vset.pattern.permute.xlu0 0
      %257 = vperm.xlu0 %256, %v247
      %v258 = vpop.permute.xlu0 %257
      %261 = vset.pattern.permute.xlu0 0
      %262 = vperm.xlu0 %261, %v248
      %v263 = vpop.permute.xlu0 %262
      %266 = vset.pattern.permute.xlu0 0
      %267 = vperm.xlu0 %266, %v249
      %v268 = vpop.permute.xlu0 %267
      %v274 = vunpack.c.l.b16 %v242
      %v275 = vunpack.c.l.b16 %v243
      %v276 = vunpack.c.l.b16 %v244
      %v277 = vunpack.c.l.b16 %v245
      %v278 = vpack.c.b16 %v275, %v274
      %v279 = vpack.c.b16 %v277, %v276
      %vm280 = vcmask 130048
      %v282 = vsel %vm280, %v278, 0
      %v285 = vsel %vm280, %v279, 0
      %287 = vmatprep.subr.bf16.mxu0 0
      %288 = vmatpush1.bf16.msra.mxu0 %v241
      %289 = vmatprep.subr.bf16.mxu0 0
      %290 = vmatpush1.bf16.msra.mxu0 0
      %291 = vmatprep.subr.bf16.mxu0 0
      %292 = vmatpush1.bf16.msra.mxu0 0
      %293 = vmatprep.subr.bf16.mxu0 0
      %294 = vmatpush1.bf16.msra.mxu0 0
      %295 = vmatprep.subr.bf16.mxu0 0
      %296 = vmatpush1.bf16.msra.mxu0 0
      %297 = vmatprep.subr.bf16.mxu0 0
      %298 = vmatpush1.bf16.msra.mxu0 0
      %299 = vmatprep.subr.bf16.mxu0 0
      %300 = vmatpush1.bf16.msra.mxu0 0
      %301 = vmatprep.subr.bf16.mxu0 0
      %302 = vmatpush1.bf16.msra.mxu0 0
      %303 = vmatprep.subr.bf16.mxu0 0
      %304 = vmatpush1.bf16.msra.mxu0 0
      %305 = vmatprep.subr.bf16.mxu0 0
      %306 = vmatpush1.bf16.msra.mxu0 0
      %307 = vmatprep.subr.bf16.mxu0 0
      %308 = vmatpush1.bf16.msra.mxu0 0
      %309 = vmatprep.subr.bf16.mxu0 0
      %310 = vmatpush1.bf16.msra.mxu0 0
      %311 = vmatprep.subr.bf16.mxu0 0
      %312 = vmatpush1.bf16.msra.mxu0 0
      %313 = vmatprep.subr.bf16.mxu0 0
      %314 = vmatpush1.bf16.msra.mxu0 0
      %315 = vmatprep.subr.bf16.mxu0 0
      %316 = vmatpush1.bf16.msra.mxu0 0
      %317 = vmatprep.subr.bf16.mxu0 0
      %318 = vmatpush1.bf16.msra.mxu0 0
      %319 = vmatprep.mubr.bf16.mxu0 0
      %320 = vmatmul.mubr.bf16.gmra.mrb[0].mxu0 %v282
      %v321 = vpop.f32.mrb[0].mxu0
      %v322 = vadd.f32 %v253, %v321
      %v323 = vpop.f32.mrb[0].mxu0
      %v324 = vpop.f32.mrb[0].mxu0
      %v325 = vadd.f32 %v258, %v324
      %v326 = vpop.f32.mrb[0].mxu0
      %327 = vmatprep.mubr.bf16.mxu0 0
      %328 = vmatmul.mubr.bf16.gmra.mrb[0].mxu0 %v285
      %v329 = vpop.f32.mrb[0].mxu0
      %v330 = vadd.f32 %v263, %v329
      %v331 = vpop.f32.mrb[0].mxu0
      %v332 = vpop.f32.mrb[0].mxu0
      %v333 = vadd.f32 %v268, %v332
      %v334 = vpop.f32.mrb[0].mxu0
      %335 = vdwg.mxu0
      %338 = vrot.lane.b32.xlu0 %v325, 2
      %v339 = vpop.permute.xlu0 %338
      %340 = vrot.lane.b32.xlu0 %v330, 2
      %v341 = vpop.permute.xlu0 %340
      %vm344 = vcmask 15360
      %v345 = vsel %vm344, 0.0, %v339
      %v346 = vsel %vm344, 0.0, %v341
      %vm347 = vcmask 146432
      %v348 = vsel %vm347, %v345, 0.0
      %v349 = vsel %vm347, %v346, 0.0
      %352 = vrot.lane.b32.xlu0 %v348, 127
      %v353 = vpop.permute.xlu0 %352
      %354 = vrot.lane.b32.xlu0 %v349, 127
      %v355 = vpop.permute.xlu0 %354
      %358 = vrot.lane.b32.xlu0 %v348, 126
      %v359 = vpop.permute.xlu0 %358
      %360 = vrot.lane.b32.xlu0 %v349, 126
      %v361 = vpop.permute.xlu0 %360
      %364 = vrot.lane.b32.xlu0 %v348, 125
      %v365 = vpop.permute.xlu0 %364
      %366 = vrot.lane.b32.xlu0 %v349, 125
      %v367 = vpop.permute.xlu0 %366
      %370 = vrot.lane.b32.xlu0 %v348, 124
      %v371 = vpop.permute.xlu0 %370
      %372 = vrot.lane.b32.xlu0 %v349, 124
      %v373 = vpop.permute.xlu0 %372
      %v376 = vpack.c.bf16 %v349, %v348
      %v377 = vpack.c.bf16 %v355, %v353
      %v378 = vpack.c.bf16 %v361, %v359
      %v379 = vpack.c.bf16 %v367, %v365
      %v380 = vpack.c.bf16 %v373, %v371
      %v381 = vld [vmem:[%s3] sm:$0xf]
      %v382 = vld [vmem:[%s3 + $0x4] sm:$0xf]
      %v383 = vld [vmem:[%s4] sm:$0xff]
      %v384 = vld [vmem:[%s4 + $0x8] sm:$0xff]
      %386 = vset.pattern.permute.xlu0 0
      %387 = vperm.xlu0 %386, %v383
      %v388 = vpop.permute.xlu0 %387
      %391 = vset.pattern.permute.xlu0 0
      %392 = vperm.xlu0 %391, %v384
      %v393 = vpop.permute.xlu0 %392
      %v397 = vunpack.c.l.b16 %v381
      %v398 = vunpack.c.l.b16 %v382
      %v399 = vpack.c.b16 %v398, %v397
      %vm400 = vcmask 654336
      %v402 = vsel %vm400, %v399, 0
      %404 = vmatprep.subr.bf16.mxu0 0
      %405 = vmatpush1.bf16.msra.mxu0 %v376
      %406 = vmatprep.subr.bf16.mxu0 0
      %407 = vmatpush1.bf16.msra.mxu0 %v377
      %408 = vmatprep.subr.bf16.mxu0 0
      %409 = vmatpush1.bf16.msra.mxu0 %v378
      %410 = vmatprep.subr.bf16.mxu0 0
      %411 = vmatpush1.bf16.msra.mxu0 %v379
      %412 = vmatprep.subr.bf16.mxu0 0
      %413 = vmatpush1.bf16.msra.mxu0 %v380
      %414 = vmatprep.subr.bf16.mxu0 0
      %415 = vmatpush1.bf16.msra.mxu0 0
      %416 = vmatprep.subr.bf16.mxu0 0
      %417 = vmatpush1.bf16.msra.mxu0 0
      %418 = vmatprep.subr.bf16.mxu0 0
      %419 = vmatpush1.bf16.msra.mxu0 0
      %420 = vmatprep.subr.bf16.mxu0 0
      %421 = vmatpush1.bf16.msra.mxu0 0
      %422 = vmatprep.subr.bf16.mxu0 0
      %423 = vmatpush1.bf16.msra.mxu0 0
      %424 = vmatprep.subr.bf16.mxu0 0
      %425 = vmatpush1.bf16.msra.mxu0 0
      %426 = vmatprep.subr.bf16.mxu0 0
      %427 = vmatpush1.bf16.msra.mxu0 0
      %428 = vmatprep.subr.bf16.mxu0 0
      %429 = vmatpush1.bf16.msra.mxu0 0
      %430 = vmatprep.subr.bf16.mxu0 0
      %431 = vmatpush1.bf16.msra.mxu0 0
      %432 = vmatprep.subr.bf16.mxu0 0
      %433 = vmatpush1.bf16.msra.mxu0 0
      %434 = vmatprep.subr.bf16.mxu0 0
      %435 = vmatpush1.bf16.msra.mxu0 0
      %436 = vmatprep.mubr.bf16.mxu0 0
      %437 = vmatmul.mubr.bf16.gmra.mrb[0].mxu0 %v402
      %v438 = vpop.f32.mrb[0].mxu0
      %v439 = vadd.f32 %v388, %v438
      %v440 = vpop.f32.mrb[0].mxu0
      %v441 = vpop.f32.mrb[0].mxu0
      %v442 = vadd.f32 %v393, %v441
      %v443 = vpop.f32.mrb[0].mxu0
      %444 = vdwg.mxu0
      %445 = vst.msk [vmem:[%s221] sm:$0xff] %vm280, %v322
      %446 = vst.msk [vmem:[%s221 + $0x8] sm:$0xff] %vm280, %v439
      %447 = vst.msk [vmem:[%s221 + $0x10] sm:$0xff] %vm280, %v442
      %448 = vst.msk [vmem:[%s221 + $0x18] sm:$0xff] %vm280, %v333
      %p449 = scmp.lt.s32.totalorder %s16, 1
      %s450 = scalar_select %p449, %s16, 1
      %s451 = smul.addr %s450, 4
      %s452 = smul.addr %s451, 8
      %s453 = scalar_lea.vmem %s5, %s452
      // Predicated region
      $region41: #{inception_block.1} parent=39 // pred_check
        %p454 = pneg %p144
      $region42: #{inception_block.1} parent=39 // pred_check_branch
        %456 = sbr.rel (%p454) target = $region44
      $region43: #{inception_block.1} parent=39 // pred_region
        _
      $region44: #{inception_block.1} parent=39 // pred_fallthru
        _
    $region40: #{inception_block.1} parent=5 // pred_fallthru
      _
    %p457 = scmp.le.s32.totalorder 2, %s11
    // Predicated region
    $region45: #{inception_block.1} parent=5 // pred_check
      %p458 = pneg %p457
    $region46: #{inception_block.1} parent=5 // pred_check_branch
      %460 = sbr.rel (%p458) target = $region48
    $region47: #{inception_block.1} parent=5 // pred_region
      %s461 = ssub.s32 %s11, 2
      // Predicated region
      $region49: #{inception_block.1} parent=47 // pred_check
        %p462 = pneg %p150
      $region50: #{inception_block.1} parent=47 // pred_check_branch
        %464 = sbr.rel (%p462) target = $region52
      $region51: #{inception_block.1} parent=47 // pred_region
        %p465 = scmp.lt.s32.totalorder %s17, 1
        %s466 = scalar_select %p465, %s17, 1
        %s467 = smul.addr %s466, 4
        %s468 = smul.addr %s467, 8
        %s469 = scalar_lea.vmem %s5, %s468
      $region52: #{inception_block.1} parent=47 // pred_fallthru
        _
    $region48: #{inception_block.1} parent=5 // pred_fallthru
      _
  $region6: #{inception_block.1} parent=0 // loop_footer
    %s15 = sadd.s32 1, %s11
  $region7: #{inception_block.1} parent=0 // loop_footer_branch
    %10 = sbr.rel target = $region3
  $region8: #{inception_block.1} parent=0 // loop_exit
    _

</llo_original>
